<compile_context>
chip_gen: v7x
topology: tpu7x:2x2x1
jax: 0.10.0
libtpu: 0.0.40
codegen_flags: <defaults>
</compile_context>

<pallas_src>
import functools

import jax
import jax.numpy as jnp
from jax import lax
from jax.experimental import pallas as pl
from jax.experimental.pallas import tpu as pltpu


def _model_kernel(xT_ref, adjT_ref, wcombT_ref, bcombT_ref, wdec_ref, omb_ref,
                  outT_ref, uT_ref, bT_ref, conv_ref, *, max_iter, tol, block):
    """Transposed fused forward.

    xT      [Fin, N]     node features (transposed)
    adjT    [N, N]       (beta*gamma*A)^T        (scales folded in the wrapper)
    wcombT  [H, Fin]     beta * (Wenc^T @ Wb^T)^T
    bcombT  [H, 1]       beta * (benc @ Wb^T)^T
    wdec    [OUT_C, H]   decoder weight
    omb     [1]  (SMEM)  1 - beta
    outT    [OUT_C, N]   output (transposed back in the wrapper)
    """
    # ---- fused encoder + bias_module (+ beta):  bT = beta * b^T  -> [H, N] ----
    bT_ref[...] = (
        jnp.dot(wcombT_ref[...], xT_ref[...], preferred_element_type=jnp.float32)
        + bcombT_ref[...]                                     # [H,1] lane-broadcast
    )

    uT_ref[...] = jnp.zeros_like(uT_ref)                      # valid_u0=False -> u0 = 0
    conv_ref[0] = jnp.int32(0)
    omb = omb_ref[0]                                          # (1 - beta), hoisted scalar

    def run_block(n_steps):
        # State stays in vregs for n_steps unrolled Picard iterations; VMEM is touched
        # and the convergence reduction is done only once per block.
        uT = uT_ref[...]
        bT = bT_ref[...]
        u_prev = uT
        for _ in range(n_steps):
            u_prev = uT
            propT = jnp.dot(uT, adjT_ref[...], preferred_element_type=jnp.float32)
            # beta*ReLU(z) == ReLU(beta*z); beta already folded into adjT / bT.
            uT = omb * uT + jnp.maximum(propT + bT, 0.0)
        uT_ref[...] = uT
        diff = jnp.max(jnp.abs(uT - u_prev))
        conv_ref[0] = (diff < tol).astype(jnp.int32)

    n_full = max_iter // block
    rem = max_iter % block

    if n_full > 0:
        def body(_, carry):
            @pl.when(conv_ref[0] == 0)             # skip remaining blocks once converged
            def _():
                run_block(block)
            return carry
        lax.fori_loop(0, n_full, body, jnp.int32(0))

    if rem > 0:
        @pl.when(conv_ref[0] == 0)
        def _():
            run_block(rem)

    # ---- act + decoder (lane-dense [OUT_C, N] store) ----
    z = jnp.maximum(uT_ref[...], 0.0)
    outT_ref[...] = jnp.dot(wdec_ref[...], z, preferred_element_type=jnp.float32)


def model_forward(x, adj, params, *, max_iter, tol, check_every=4):
    """x: [N, Fin] f32, adj: [N, N] f32 dense weighted adjacency."""
    N, fin = x.shape
    hid = params["wb_t"].shape[0]
    out_c = params["wdec_t"].shape[1]

    # Scalar sigmoids + all scale folds done once in the wrapper.
    gamma = jax.nn.sigmoid(params["scalars"][0])
    beta = jax.nn.sigmoid(params["scalars"][1])
    one_minus_beta = jnp.reshape(1.0 - beta, (1,)).astype(jnp.float32)

    w_comb = params["wenc_t"] @ params["wb_t"]             # [Fin, H]  enc -> bias_module
    b_comb = params["benc"] @ params["wb_t"]               # [1,  H]

    xT = x.T.astype(jnp.float32)                           # [Fin, N]
    adjT_bg = ((beta * gamma) * adj).T.astype(jnp.float32) # [N, N]  beta*gamma folded into A
    wcombT_b = (beta * w_comb.T).astype(jnp.float32)       # [H, Fin] beta folded into b
    bcombT_b = (beta * b_comb.T).astype(jnp.float32)       # [H, 1]
    wdec = params["wdec_t"].T.astype(jnp.float32)          # [OUT_C, H]

    vmem = pl.BlockSpec(memory_space=pltpu.MemorySpace.VMEM)
    smem = pl.BlockSpec(memory_space=pltpu.MemorySpace.SMEM)

    # Advisory cost: the hidden max_iter loop dominates.
    flops = int(2 * max_iter * N * N * hid + 2 * hid * fin * N + 2 * out_c * hid * N)
    bytes_accessed = int(4 * (N * N + fin * N + hid * fin + hid + out_c * hid + out_c * N))

    # Generation-aware VMEM budget (v7x only has 64 MiB physical VMEM).
    needed = 4 * (N * N + fin * N + hid * fin + hid + out_c * hid + out_c * N + 2 * hid * N)
    try:
        vmem_cap = int(pltpu.get_tpu_info().vmem_capacity_bytes)
    except Exception:
        vmem_cap = 64 * 1024 * 1024
    vmem_limit = int(min(max(2 * needed, 32 * 1024 * 1024),
                         max(vmem_cap - 16 * 1024 * 1024, 16 * 1024 * 1024)))

    kernel = functools.partial(_model_kernel, max_iter=max_iter, tol=tol,
                               block=max(1, int(check_every)))
    outT = pl.pallas_call(
        kernel,
        out_shape=jax.ShapeDtypeStruct((out_c, N), jnp.float32),
        in_specs=[vmem, vmem, vmem, vmem, vmem, smem],
        out_specs=vmem,
        scratch_shapes=[
            pltpu.VMEM((hid, N), jnp.float32),             # u^T
            pltpu.VMEM((hid, N), jnp.float32),             # beta * b^T
            pltpu.SMEM((1,), jnp.int32),                   # converged flag
        ],
        compiler_params=pltpu.CompilerParams(vmem_limit_bytes=vmem_limit),
        cost_estimate=pl.CostEstimate(flops=flops, transcendentals=0,
                                      bytes_accessed=bytes_accessed),
    )(xT, adjT_bg, wcombT_b, bcombT_b, wdec, one_minus_beta)
    return outT.T


def _reference_forward(x, adj, params, *, max_iter, tol, check_every=4):
    """Pure-JAX reference with the same block-cadence convergence check as the kernel."""
    h = x @ params["wenc_t"] + params["benc"]
    b = h @ params["wb_t"]
    gamma = jax.nn.sigmoid(params["scalars"][0])
    beta = jax.nn.sigmoid(params["scalars"][1])
    u = jnp.zeros_like(b)
    for it in range(max_iter):
        u_prev = u
        u = (1.0 - beta) * u + beta * jnp.maximum(gamma * (adj @ u) + b, 0.0)
        at_check = ((it + 1) % check_every == 0) or (it + 1 == max_iter)
        if at_check and float(jnp.max(jnp.abs(u - u_prev))) < tol:
            break
    return jnp.maximum(u, 0.0) @ params["wdec_t"]


if __name__ == "__main__":
    # Small WebKB-like problem sizes.
    N, IN_C, HID, OUT_C = 64, 32, 32, 8
    N_EDGES = 256
    MAX_ITER, TOL = 20, 1e-6
    BETA_INIT, GAMMA_INIT = 0.0, 0.0

    key = jax.random.PRNGKey(0)
    kx, ke1, ke2, kw, k1, k2, k3, k4 = jax.random.split(key, 8)

    # Node features.
    x = jax.random.normal(kx, (N, IN_C), dtype=jnp.float32)

    # Synthetic graph: edge_index [2, E], edge_weight [E] -> dense adjacency (glue).
    src = jax.random.randint(ke1, (N_EDGES,), 0, N)
    dst = jax.random.randint(ke2, (N_EDGES,), 0, N)
    w = jax.random.uniform(kw, (N_EDGES,), dtype=jnp.float32) / float(N_EDGES) * N
    adj = jnp.zeros((N, N), jnp.float32).at[dst, src].add(w)
    # Row-normalize so the propagation operator is well scaled.
    adj = adj / jnp.maximum(adj.sum(axis=1, keepdims=True), 1e-6)

    # Deterministic parameters (PyTorch Linear stores W as [out, in]; we keep W^T).
    s_enc = 1.0 / jnp.sqrt(jnp.float32(IN_C))
    s_hid = 1.0 / jnp.sqrt(jnp.float32(HID))
    params = {
        "wenc_t": (jax.random.uniform(k1, (HID, IN_C), jnp.float32, -1, 1) * s_enc).T,
        "benc": (jax.random.uniform(k2, (1, HID), jnp.float32, -1, 1) * s_enc),
        "wb_t": (jax.random.uniform(k3, (HID, HID), jnp.float32, -1, 1) * s_hid * 0.5).T,
        "wdec_t": (jax.random.uniform(k4, (OUT_C, HID), jnp.float32, -1, 1) * s_hid).T,
        "scalars": jnp.array([GAMMA_INIT, BETA_INIT], dtype=jnp.float32),
    }

    out = model_forward(x, adj, params, max_iter=MAX_ITER, tol=TOL, check_every=4)
    out = jax.block_until_ready(out)

    ref = _reference_forward(x, adj, params, max_iter=MAX_ITER, tol=TOL, check_every=4)
    assert out.shape == (N, OUT_C)
    assert jnp.allclose(out, ref, atol=1e-4, rtol=1e-4), float(jnp.max(jnp.abs(out - ref)))

    print("KERNEL_OK")
</pallas_src>

<mosaic_0001>
module attributes {stable_mosaic.version = 11 : i64} {
  func.func @_model_kernel(%arg0: memref<32x64xf32, #tpu.memory_space<vmem>>, %arg1: memref<64x64xf32, #tpu.memory_space<vmem>>, %arg2: memref<32x32xf32, #tpu.memory_space<vmem>>, %arg3: memref<32x1xf32, #tpu.memory_space<vmem>>, %arg4: memref<8x32xf32, #tpu.memory_space<vmem>>, %arg5: memref<1xf32, #tpu.memory_space<smem>>, %arg6: memref<8x64xf32, #tpu.memory_space<vmem>>, %arg7: memref<32x64xf32, #tpu.memory_space<vmem>>, %arg8: memref<32x64xf32, #tpu.memory_space<vmem>>, %arg9: memref<1xi32, #tpu.memory_space<smem>>) attributes {dimension_semantics = [], scalar_prefetch = 0 : i64, scratch_operands = 3 : i64, tpu.core_type = #tpu.core_type<tc>} {
    %c0 = arith.constant 0 : index
    %c0_0 = arith.constant 0 : index
    %0 = vector.load %arg2[%c0, %c0_0] : memref<32x32xf32, #tpu.memory_space<vmem>>, vector<32x32xf32>
    %c0_1 = arith.constant 0 : index
    %c0_2 = arith.constant 0 : index
    %1 = vector.load %arg0[%c0_1, %c0_2] : memref<32x64xf32, #tpu.memory_space<vmem>>, vector<32x64xf32>
    %cst = arith.constant dense<0.000000e+00> : vector<32x64xf32>
    %2 = tpu.matmul %0, %1, %cst {dimension_numbers = #tpu.dot_dimension_numbers<[1], [0], [0], [1], [0, 0, 1, 1], [], []>} : vector<32x32xf32>, vector<32x64xf32>, vector<32x64xf32> -> vector<32x64xf32>
    %c0_3 = arith.constant 0 : index
    %c0_4 = arith.constant 0 : index
    %3 = vector.load %arg3[%c0_3, %c0_4] : memref<32x1xf32, #tpu.memory_space<vmem>>, vector<32x1xf32>
    %4 = vector.broadcast %3 : vector<32x1xf32> to vector<32x64xf32>
    %5 = arith.addf %2, %4 : vector<32x64xf32>
    %c0_5 = arith.constant 0 : index
    %c0_6 = arith.constant 0 : index
    %6 = vector.load %arg8[%c0_5, %c0_6] : memref<32x64xf32, #tpu.memory_space<vmem>>, vector<32x64xf32>
    tpu.vector_store %arg8[%c0_5, %c0_6], %5 {strides = array<i32>} : memref<32x64xf32, #tpu.memory_space<vmem>>, vector<32x64xf32>,
    %cst_7 = arith.constant 0.000000e+00 : f32
    %7 = vector.broadcast %cst_7 : f32 to vector<32x64xf32>
    %c0_8 = arith.constant 0 : index
    %c0_9 = arith.constant 0 : index
    %8 = vector.load %arg7[%c0_8, %c0_9] : memref<32x64xf32, #tpu.memory_space<vmem>>, vector<32x64xf32>
    tpu.vector_store %arg7[%c0_8, %c0_9], %7 {strides = array<i32>} : memref<32x64xf32, #tpu.memory_space<vmem>>, vector<32x64xf32>,
    %c0_i32 = arith.constant 0 : i32
    %c0_10 = arith.constant 0 : index
    %9 = memref.load %arg9[%c0_10] : memref<1xi32, #tpu.memory_space<smem>>
    memref.store %c0_i32, %arg9[%c0_10] : memref<1xi32, #tpu.memory_space<smem>>
    %c0_11 = arith.constant 0 : index
    %10 = memref.load %arg5[%c0_11] : memref<1xf32, #tpu.memory_space<smem>>
    %c0_i32_12 = arith.constant 0 : i32
    %c5_i32 = arith.constant 5 : i32
    %11 = arith.addi %c0_i32_12, %c5_i32 : i32
    %c1_i32 = arith.constant 1 : i32
    scf.for %arg10 = %c0_i32_12 to %11 step %c1_i32  : i32 {
      %c0_21 = arith.constant 0 : index
      %18 = memref.load %arg9[%c0_21] : memref<1xi32, #tpu.memory_space<smem>>
      %c0_i32_22 = arith.constant 0 : i32
      %19 = arith.cmpi eq, %18, %c0_i32_22 : i32
      %20 = arith.extui %19 : i1 to i32
      %c0_i32_23 = arith.constant 0 : i32
      %21 = arith.cmpi ne, %20, %c0_i32_23 : i32
      scf.if %21 {
        %c0_24 = arith.constant 0 : index
        %c0_25 = arith.constant 0 : index
        %22 = vector.load %arg7[%c0_24, %c0_25] : memref<32x64xf32, #tpu.memory_space<vmem>>, vector<32x64xf32>
        %c0_26 = arith.constant 0 : index
        %c0_27 = arith.constant 0 : index
        %23 = vector.load %arg8[%c0_26, %c0_27] : memref<32x64xf32, #tpu.memory_space<vmem>>, vector<32x64xf32>
        %c0_28 = arith.constant 0 : index
        %c0_29 = arith.constant 0 : index
        %24 = vector.load %arg1[%c0_28, %c0_29] : memref<64x64xf32, #tpu.memory_space<vmem>>, vector<64x64xf32>
        %cst_30 = arith.constant dense<0.000000e+00> : vector<32x64xf32>
        %25 = tpu.matmul %22, %24, %cst_30 {dimension_numbers = #tpu.dot_dimension_numbers<[1], [0], [0], [1], [0, 0, 1, 1], [], []>} : vector<32x64xf32>, vector<64x64xf32>, vector<32x64xf32> -> vector<32x64xf32>
        %26 = vector.broadcast %10 : f32 to vector<32x64xf32>
        %27 = arith.mulf %26, %22 : vector<32x64xf32>
        %28 = arith.addf %25, %23 : vector<32x64xf32>
        %cst_31 = arith.constant 0.000000e+00 : f32
        %29 = vector.broadcast %cst_31 : f32 to vector<32x64xf32>
        %30 = arith.maximumf %28, %29 : vector<32x64xf32>
        %31 = arith.addf %27, %30 : vector<32x64xf32>
        %c0_32 = arith.constant 0 : index
        %c0_33 = arith.constant 0 : index
        %32 = vector.load %arg1[%c0_32, %c0_33] : memref<64x64xf32, #tpu.memory_space<vmem>>, vector<64x64xf32>
        %cst_34 = arith.constant dense<0.000000e+00> : vector<32x64xf32>
        %33 = tpu.matmul %31, %32, %cst_34 {dimension_numbers = #tpu.dot_dimension_numbers<[1], [0], [0], [1], [0, 0, 1, 1], [], []>} : vector<32x64xf32>, vector<64x64xf32>, vector<32x64xf32> -> vector<32x64xf32>
        %34 = vector.broadcast %10 : f32 to vector<32x64xf32>
        %35 = arith.mulf %34, %31 : vector<32x64xf32>
        %36 = arith.addf %33, %23 : vector<32x64xf32>
        %cst_35 = arith.constant 0.000000e+00 : f32
        %37 = vector.broadcast %cst_35 : f32 to vector<32x64xf32>
        %38 = arith.maximumf %36, %37 : vector<32x64xf32>
        %39 = arith.addf %35, %38 : vector<32x64xf32>
        %c0_36 = arith.constant 0 : index
        %c0_37 = arith.constant 0 : index
        %40 = vector.load %arg1[%c0_36, %c0_37] : memref<64x64xf32, #tpu.memory_space<vmem>>, vector<64x64xf32>
        %cst_38 = arith.constant dense<0.000000e+00> : vector<32x64xf32>
        %41 = tpu.matmul %39, %40, %cst_38 {dimension_numbers = #tpu.dot_dimension_numbers<[1], [0], [0], [1], [0, 0, 1, 1], [], []>} : vector<32x64xf32>, vector<64x64xf32>, vector<32x64xf32> -> vector<32x64xf32>
        %42 = vector.broadcast %10 : f32 to vector<32x64xf32>
        %43 = arith.mulf %42, %39 : vector<32x64xf32>
        %44 = arith.addf %41, %23 : vector<32x64xf32>
        %cst_39 = arith.constant 0.000000e+00 : f32
        %45 = vector.broadcast %cst_39 : f32 to vector<32x64xf32>
        %46 = arith.maximumf %44, %45 : vector<32x64xf32>
        %47 = arith.addf %43, %46 : vector<32x64xf32>
        %c0_40 = arith.constant 0 : index
        %c0_41 = arith.constant 0 : index
        %48 = vector.load %arg1[%c0_40, %c0_41] : memref<64x64xf32, #tpu.memory_space<vmem>>, vector<64x64xf32>
        %cst_42 = arith.constant dense<0.000000e+00> : vector<32x64xf32>
        %49 = tpu.matmul %47, %48, %cst_42 {dimension_numbers = #tpu.dot_dimension_numbers<[1], [0], [0], [1], [0, 0, 1, 1], [], []>} : vector<32x64xf32>, vector<64x64xf32>, vector<32x64xf32> -> vector<32x64xf32>
        %50 = vector.broadcast %10 : f32 to vector<32x64xf32>
        %51 = arith.mulf %50, %47 : vector<32x64xf32>
        %52 = arith.addf %49, %23 : vector<32x64xf32>
        %cst_43 = arith.constant 0.000000e+00 : f32
        %53 = vector.broadcast %cst_43 : f32 to vector<32x64xf32>
        %54 = arith.maximumf %52, %53 : vector<32x64xf32>
        %55 = arith.addf %51, %54 : vector<32x64xf32>
        %c0_44 = arith.constant 0 : index
        %c0_45 = arith.constant 0 : index
        %56 = vector.load %arg7[%c0_44, %c0_45] : memref<32x64xf32, #tpu.memory_space<vmem>>, vector<32x64xf32>
        tpu.vector_store %arg7[%c0_44, %c0_45], %55 {strides = array<i32>} : memref<32x64xf32, #tpu.memory_space<vmem>>, vector<32x64xf32>,
        %57 = arith.subf %55, %47 : vector<32x64xf32>
        %58 = math.absf %57 : vector<32x64xf32>
        %59 = vector.shape_cast %58 : vector<32x64xf32> to vector<1x32x64xf32>
        %cst_46 = arith.constant dense<0xFF800000> : vector<1xf32>
        %60 = vector.multi_reduction <maximumf>, %59, %cst_46 [1, 2] : vector<1x32x64xf32> to vector<1xf32>
        %61 = vector.shape_cast %60 : vector<1xf32> to vector<1x1x1xf32>
        %62 = vector.extract %61[0, 0, 0] : f32 from vector<1x1x1xf32>
        %cst_47 = arith.constant 9.99999997E-7 : f32
        %63 = arith.cmpf olt, %62, %cst_47 : f32
        %64 = arith.extui %63 : i1 to i32
        %c0_48 = arith.constant 0 : index
        %65 = memref.load %arg9[%c0_48] : memref<1xi32, #tpu.memory_space<smem>>
        memref.store %64, %arg9[%c0_48] : memref<1xi32, #tpu.memory_space<smem>>
      } else {
      }
    }
    %c0_13 = arith.constant 0 : index
    %c0_14 = arith.constant 0 : index
    %12 = vector.load %arg7[%c0_13, %c0_14] : memref<32x64xf32, #tpu.memory_space<vmem>>, vector<32x64xf32>
    %cst_15 = arith.constant 0.000000e+00 : f32
    %13 = vector.broadcast %cst_15 : f32 to vector<32x64xf32>
    %14 = arith.maximumf %12, %13 : vector<32x64xf32>
    %c0_16 = arith.constant 0 : index
    %c0_17 = arith.constant 0 : index
    %15 = vector.load %arg4[%c0_16, %c0_17] : memref<8x32xf32, #tpu.memory_space<vmem>>, vector<8x32xf32>
    %cst_18 = arith.constant dense<0.000000e+00> : vector<8x64xf32>
    %16 = tpu.matmul %15, %14, %cst_18 {dimension_numbers = #tpu.dot_dimension_numbers<[1], [0], [0], [1], [0, 0, 1, 1], [], []>} : vector<8x32xf32>, vector<32x64xf32>, vector<8x64xf32> -> vector<8x64xf32>
    %c0_19 = arith.constant 0 : index
    %c0_20 = arith.constant 0 : index
    %17 = vector.load %arg6[%c0_19, %c0_20] : memref<8x64xf32, #tpu.memory_space<vmem>>, vector<8x64xf32>
    tpu.vector_store %arg6[%c0_19, %c0_20], %16 {strides = array<i32>} : memref<8x64xf32, #tpu.memory_space<vmem>>, vector<8x64xf32>,
    return
  }
}

</mosaic_0001>

<llo_original>
// kernel: tpu_custom_call.1
$region0: #{tpu_custom_call.1}
  #allocation0 [shape = 'u32[]', space=smem, size = 0x4, offset = 0x4, fixed_abs, tag = 'smem constant byte address 0x4 - core index']
  #allocation1 [shape = 'u32[144,128]{1,0:T(1,128)}', space=vmem, size = 0x12000, scoped, tag = 'internal scratch']
  #allocation2 [shape = 'f32[32,64]{1,0:T(8,128)}', space=vmem, size = 0x4000, scoped, tag = 'scratch operand']
  #allocation3 [shape = 'f32[32,64]{1,0:T(8,128)}', space=vmem, size = 0x4000, scoped, tag = 'scratch operand']
  #allocation4 [shape = 's32[1]{0:T(128)}', space=smem, size = 0x200, scoped, tag = 'scratch operand']
  #allocation5 [shape = 'f32[1]{0:T(128)S(6)}', space=smem, size = 0x200, scoped, tag = 'scoped memory for tpu_custom_call.1']
  %s0 = inlined_call_operand.vmem [shape: f32[32,64], index: 0, kind: input, shape index: {}]
  %s1 = inlined_call_operand.hbm [shape: f32[64,64], index: 1, kind: input, shape index: {}]
  %s2 = inlined_call_operand.hbm [shape: f32[32,32], index: 2, kind: input, shape index: {}]
  %s3 = inlined_call_operand.vmem [shape: f32[32,1], index: 3, kind: input, shape index: {}]
  %s4 = inlined_call_operand.vmem [shape: f32[8,32], index: 4, kind: input, shape index: {}]
  %s5 = inlined_call_operand.<no memory space> [shape: f32[1], index: 5, kind: input, shape index: {}]
  %s6 = inlined_call_operand.hbm [shape: f32[8,64], index: 6, kind: output, shape index: {}]
  %s7 = sld [smem:[#allocation0]]
  $region53: #{tpu_custom_call.1} parent=0
    _
  %s9 = ssub.s32 1, %s7
  %s10 = scalar_select 0, %s9, %s7
  %11 = sst [smem:[#allocation5]] %s5
  $region1: #{tpu_custom_call.1} parent=0
    #allocation6 [shape = 'u8[32768]{0}', space=vmem, size = 0x8000, scoped, tag = 'input window, operand 1, single buffered']
    #allocation7 [shape = 's32[1]{0}', space=sflag, size = 0x4, scoped, tag = 'scoped memory for tpu_custom_call.1']
    #allocation8 [shape = 's32[1]{0}', space=sflag, size = 0x4, scoped, tag = 'scoped memory for tpu_custom_call.1']
    #allocation9 [shape = 'u8[16384]{0}', space=vmem, size = 0x4000, scoped, tag = 'input window, operand 2, single buffered']
    #allocation10 [shape = 's32[1]{0}', space=sflag, size = 0x4, scoped, tag = 'scoped memory for tpu_custom_call.1']
    #allocation11 [shape = 'u8[4096]{0}', space=vmem, size = 0x1000, scoped, tag = 'output window, operand 0, single buffered']
    %12 = vsyncpa [#allocation7], 0
    %13 = vsyncpa [#allocation10], 0
    %14 = vsyncpa [#allocation8], 0
    // Predicated region
    $region2: #{tpu_custom_call.1} parent=1 // pred_check
      _
    $region3: #{tpu_custom_call.1} parent=1 // pred_check_branch
      %16 = sbr.rel (0) target = $region5
    $region4: #{tpu_custom_call.1} parent=1 // pred_region
      _
    $region5: #{tpu_custom_call.1} parent=1 // pred_fallthru
      _
    // Predicated region
    $region6: #{tpu_custom_call.1} parent=1 // pred_check
      _
    $region7: #{tpu_custom_call.1} parent=1 // pred_check_branch
      %18 = sbr.rel (0) target = $region9
    $region8: #{tpu_custom_call.1} parent=1 // pred_region
      %s20 = ssub.s32 1024, 1024
      %21 = vsyncadd [#allocation7], %s20
      %s22 = sshll.u32 [#allocation6], 4
      %s23 = int_to_ptr.vmem [resolvable:$true] %s22
      %28 = dma.hbm_to_vmem [thread:$0]  %s1, 1024, %s23, [#allocation7], 128, 128, 8
    $region9: #{tpu_custom_call.1} parent=1 // pred_fallthru
      _
    // Predicated region
    $region10: #{tpu_custom_call.1} parent=1 // pred_check
      _
    $region11: #{tpu_custom_call.1} parent=1 // pred_check_branch
      %30 = sbr.rel (0) target = $region13
    $region12: #{tpu_custom_call.1} parent=1 // pred_region
      %s32 = ssub.s32 512, 512
      %33 = vsyncadd [#allocation10], %s32
      %s34 = sshll.u32 [#allocation9], 4
      %s35 = int_to_ptr.vmem [resolvable:$true] %s34
      %40 = dma.hbm_to_vmem [thread:$0]  %s2, 512, %s35, [#allocation10], 128, 128, 8
    $region13: #{tpu_custom_call.1} parent=1 // pred_fallthru
      _
    // Predicated region
    $region14: #{tpu_custom_call.1} parent=1 // pred_check
      _
    $region15: #{tpu_custom_call.1} parent=1 // pred_check_branch
      %42 = sbr.rel (0) target = $region17
    $region16: #{tpu_custom_call.1} parent=1 // pred_region
      _
    $region17: #{tpu_custom_call.1} parent=1 // pred_fallthru
      _
    // Predicated region
    $region18: #{tpu_custom_call.1} parent=1 // pred_check
      _
    $region19: #{tpu_custom_call.1} parent=1 // pred_check_branch
      %44 = sbr.rel (0) target = $region21
    $region20: #{tpu_custom_call.1} parent=1 // pred_region
      _
    $region21: #{tpu_custom_call.1} parent=1 // pred_fallthru
      _
    // Predicated region
    $region22: #{tpu_custom_call.1} parent=1 // pred_check
      _
    $region23: #{tpu_custom_call.1} parent=1 // pred_check_branch
      %46 = sbr.rel (0) target = $region25
    $region24: #{tpu_custom_call.1} parent=1 // pred_region
      _
    $region25: #{tpu_custom_call.1} parent=1 // pred_fallthru
      _
    // Predicated region
    $region26: #{tpu_custom_call.1} parent=1 // pred_check
      _
    $region27: #{tpu_custom_call.1} parent=1 // pred_check_branch
      %48 = sbr.rel (0) target = $region29
    $region28: #{tpu_custom_call.1} parent=1 // pred_region
      %49 = dma.done [#allocation7], 1024
    $region29: #{tpu_custom_call.1} parent=1 // pred_fallthru
      _
    // Predicated region
    $region30: #{tpu_custom_call.1} parent=1 // pred_check
      _
    $region31: #{tpu_custom_call.1} parent=1 // pred_check_branch
      %51 = sbr.rel (0) target = $region33
    $region32: #{tpu_custom_call.1} parent=1 // pred_region
      %52 = dma.done [#allocation10], 512
    $region33: #{tpu_custom_call.1} parent=1 // pred_fallthru
      _
    %v53 = vld [vmem:[#allocation9] sm:$0xff]
    %v54 = vld [vmem:[#allocation9 + $0x8] sm:$0xff]
    %v55 = vld [vmem:[#allocation9 + $0x10] sm:$0xff]
    %v56 = vld [vmem:[#allocation9 + $0x18] sm:$0xff]
    %v57 = vld [vmem:[%s0] sm:$0xff]
    %v58 = vld [vmem:[%s0 + $0x8] sm:$0xff]
    %v59 = vld [vmem:[%s0 + $0x10] sm:$0xff]
    %v60 = vld [vmem:[%s0 + $0x18] sm:$0xff]
    %v61 = vld [vmem:[%s3] sm:$0xff]
    %v62 = vld [vmem:[%s3 + $0x8] sm:$0xff]
    %v63 = vld [vmem:[%s3 + $0x10] sm:$0xff]
    %v64 = vld [vmem:[%s3 + $0x18] sm:$0xff]
    %66 = vset.pattern.permute.xlu0 0
    %67 = vperm.xlu0 %66, %v61
    %v68 = vpop.permute.xlu0 %67
    %71 = vset.pattern.permute.xlu0 0
    %72 = vperm.xlu0 %71, %v62
    %v73 = vpop.permute.xlu0 %72
    %76 = vset.pattern.permute.xlu0 0
    %77 = vperm.xlu0 %76, %v63
    %v78 = vpop.permute.xlu0 %77
    %81 = vset.pattern.permute.xlu0 0
    %82 = vperm.xlu0 %81, %v64
    %v83 = vpop.permute.xlu0 %82
    %vm85 = vcmask 261120
    %v87 = vsel %vm85, %v53, 0
    %v90 = vsel %vm85, %v54, 0
    %v93 = vsel %vm85, %v55, 0
    %v96 = vsel %vm85, %v56, 0
    %98 = vmatprep.subr.mxu0 0.0
    %99 = vmatpush1.msra.mxu0 %v57
    %100 = vmatprep.subr.mxu0 0.0
    %101 = vmatpush1.msra.mxu0 %v58
    %102 = vmatprep.subr.mxu0 0.0
    %103 = vmatpush1.msra.mxu0 %v59
    %104 = vmatprep.subr.mxu0 0.0
    %105 = vmatpush1.msra.mxu0 %v60
    %106 = vmatprep.subr.mxu0 0.0
    %107 = vmatpush1.msra.mxu0 0.0
    %108 = vmatprep.subr.mxu0 0.0
    %109 = vmatpush1.msra.mxu0 0.0
    %110 = vmatprep.subr.mxu0 0.0
    %111 = vmatpush1.msra.mxu0 0.0
    %112 = vmatprep.subr.mxu0 0.0
    %113 = vmatpush1.msra.mxu0 0.0
    %114 = vmatprep.subr.mxu0 0.0
    %115 = vmatpush1.msra.mxu0 0.0
    %116 = vmatprep.subr.mxu0 0.0
    %117 = vmatpush1.msra.mxu0 0.0
    %118 = vmatprep.subr.mxu0 0.0
    %119 = vmatpush1.msra.mxu0 0.0
    %120 = vmatprep.subr.mxu0 0.0
    %121 = vmatpush1.msra.mxu0 0.0
    %122 = vmatprep.subr.mxu0 0.0
    %123 = vmatpush1.msra.mxu0 0.0
    %124 = vmatprep.subr.mxu0 0.0
    %125 = vmatpush1.msra.mxu0 0.0
    %126 = vmatprep.subr.mxu0 0.0
    %127 = vmatpush1.msra.mxu0 0.0
    %128 = vmatprep.subr.mxu0 0.0
    %129 = vmatpush1.msra.mxu0 0.0
    %130 = vmatprep.subr.mxu0 0.0
    %131 = vmatpush1.msra.mxu0 0.0
    %132 = vmatprep.subr.mxu0 0.0
    %133 = vmatpush1.msra.mxu0 0.0
    %134 = vmatprep.subr.mxu0 0.0
    %135 = vmatpush1.msra.mxu0 0.0
    %136 = vmatprep.subr.mxu0 0.0
    %137 = vmatpush1.msra.mxu0 0.0
    %138 = vmatprep.subr.mxu0 0.0
    %139 = vmatpush1.msra.mxu0 0.0
    %140 = vmatprep.subr.mxu0 0.0
    %141 = vmatpush1.msra.mxu0 0.0
    %142 = vmatprep.subr.mxu0 0.0
    %143 = vmatpush1.msra.mxu0 0.0
    %144 = vmatprep.subr.mxu0 0.0
    %145 = vmatpush1.msra.mxu0 0.0
    %146 = vmatprep.subr.mxu0 0.0
    %147 = vmatpush1.msra.mxu0 0.0
    %148 = vmatprep.subr.mxu0 0.0
    %149 = vmatpush1.msra.mxu0 0.0
    %150 = vmatprep.subr.mxu0 0.0
    %151 = vmatpush1.msra.mxu0 0.0
    %152 = vmatprep.subr.mxu0 0.0
    %153 = vmatpush1.msra.mxu0 0.0
    %154 = vmatprep.subr.mxu0 0.0
    %155 = vmatpush1.msra.mxu0 0.0
    %156 = vmatprep.subr.mxu0 0.0
    %157 = vmatpush1.msra.mxu0 0.0
    %158 = vmatprep.subr.mxu0 0.0
    %159 = vmatpush1.msra.mxu0 0.0
    %160 = vmatprep.subr.mxu0 0.0
    %161 = vmatpush1.msra.mxu0 0.0
    %162 = vmatprep.mubr.f32.mxu0 0.0
    %163 = vmatmul.mubr.f32.gmra.mrb[0].mxu0 %v87
    %v164 = vpop.f32.mrb[0].mxu0
    %v165 = vadd.f32 %v68, %v164
    %v166 = vpop.f32.mrb[0].mxu0
    %167 = vmatprep.mubr.f32.mxu0 0.0
    %168 = vmatmul.mubr.f32.gmra.mrb[0].mxu0 %v90
    %v169 = vpop.f32.mrb[0].mxu0
    %v170 = vadd.f32 %v73, %v169
    %v171 = vpop.f32.mrb[0].mxu0
    %172 = vmatprep.mubr.f32.mxu0 0.0
    %173 = vmatmul.mubr.f32.gmra.mrb[0].mxu0 %v93
    %v174 = vpop.f32.mrb[0].mxu0
    %v175 = vadd.f32 %v78, %v174
    %v176 = vpop.f32.mrb[0].mxu0
    %177 = vmatprep.mubr.f32.mxu0 0.0
    %178 = vmatmul.mubr.f32.gmra.mrb[0].mxu0 %v96
    %v179 = vpop.f32.mrb[0].mxu0
    %v180 = vadd.f32 %v83, %v179
    %v181 = vpop.f32.mrb[0].mxu0
    %182 = vdwg.mxu0
    %vm183 = vcmask 523264
    %184 = vst.msk [vmem:[#allocation3] sm:$0xff] %vm183, %v165
    %185 = vst.msk [vmem:[#allocation3 + $0x8] sm:$0xff] %vm183, %v170
    %186 = vst.msk [vmem:[#allocation3 + $0x10] sm:$0xff] %vm183, %v175
    %187 = vst.msk [vmem:[#allocation3 + $0x18] sm:$0xff] %vm183, %v180
    %188 = vst.msk [vmem:[#allocation2] sm:$0xff] %vm183, 0.0
    %189 = vst.msk [vmem:[#allocation2 + $0x8] sm:$0xff] %vm183, 0.0
    %190 = vst.msk [vmem:[#allocation2 + $0x10] sm:$0xff] %vm183, 0.0
    %191 = vst.msk [vmem:[#allocation2 + $0x18] sm:$0xff] %vm183, 0.0
    %s192 = scalar_lea.smem [#allocation4], 0
    %193 = sst [smem:[%s192]] 0
    %s194 = sld [smem:[#allocation5]]
    loop: start=0, step=1, limit=5
    $region34: #{tpu_custom_call.1} parent=1 // loop_pre_header
      _
    $region35: #{tpu_custom_call.1} parent=1 // loop_header
      %s196 = sphi 0, %s200
      %p197 = scmp.ge.s32.totalorder %s196, 5
    $region36: #{tpu_custom_call.1} parent=1 // loop_header_branch
      %199 = sbr.rel (%p197) target = $region40
    $region37: #{tpu_custom_call.1} parent=1 // loop_body
      %s201 = sld [smem:[#allocation4]]
      %p202 = scmp.eq.s32.totalorder %s201, 0
      // Predicated region
      $region41: #{tpu_custom_call.1} parent=37 // pred_check
        %p203 = pneg %p202
      $region42: #{tpu_custom_call.1} parent=37 // pred_check_branch
        %205 = sbr.rel (%p203) target = $region44
      $region43: #{tpu_custom_call.1} parent=37 // pred_region
        %v206 = vld [vmem:[#allocation2] sm:$0xff]
        %v207 = vld [vmem:[#allocation2 + $0x8] sm:$0xff]
        %v208 = vld [vmem:[#allocation2 + $0x10] sm:$0xff]
        %v209 = vld [vmem:[#allocation2 + $0x18] sm:$0xff]
        %v210 = vld [vmem:[#allocation3] sm:$0xff]
        %v211 = vld [vmem:[#allocation3 + $0x8] sm:$0xff]
        %v212 = vld [vmem:[#allocation3 + $0x10] sm:$0xff]
        %v213 = vld [vmem:[#allocation3 + $0x18] sm:$0xff]
        %v214 = vld [vmem:[#allocation6] sm:$0xff]
        %v215 = vld [vmem:[#allocation6 + $0x8] sm:$0xff]
        %v216 = vld [vmem:[#allocation6 + $0x10] sm:$0xff]
        %v217 = vld [vmem:[#allocation6 + $0x18] sm:$0xff]
        %v218 = vld [vmem:[#allocation6 + $0x20] sm:$0xff]
        %v219 = vld [vmem:[#allocation6 + $0x28] sm:$0xff]
        %v220 = vld [vmem:[#allocation6 + $0x30] sm:$0xff]
        %v221 = vld [vmem:[#allocation6 + $0x38] sm:$0xff]
        %v222 = vstv %s194
        %v223 = vmul.f32 %v222, %v206
        %v224 = vmul.f32 %v222, %v207
        %v225 = vmul.f32 %v222, %v208
        %v226 = vmul.f32 %v222, %v209
        %v228 = vsel %vm183, %v206, 0
        %v231 = vsel %vm183, %v207, 0
        %v234 = vsel %vm183, %v208, 0
        %v237 = vsel %vm183, %v209, 0
        %239 = vmatprep.subr.mxu0 0.0
        %240 = vmatpush1.msra.mxu0 %v214
        %241 = vmatprep.subr.mxu0 0.0
        %242 = vmatpush1.msra.mxu0 %v215
        %243 = vmatprep.subr.mxu0 0.0
        %244 = vmatpush1.msra.mxu0 %v216
        %245 = vmatprep.subr.mxu0 0.0
        %246 = vmatpush1.msra.mxu0 %v217
        %247 = vmatprep.subr.mxu0 0.0
        %248 = vmatpush1.msra.mxu0 %v218
        %249 = vmatprep.subr.mxu0 0.0
        %250 = vmatpush1.msra.mxu0 %v219
        %251 = vmatprep.subr.mxu0 0.0
        %252 = vmatpush1.msra.mxu0 %v220
        %253 = vmatprep.subr.mxu0 0.0
        %254 = vmatpush1.msra.mxu0 %v221
        %255 = vmatprep.subr.mxu0 0.0
        %256 = vmatpush1.msra.mxu0 0.0
        %257 = vmatprep.subr.mxu0 0.0
        %258 = vmatpush1.msra.mxu0 0.0
        %259 = vmatprep.subr.mxu0 0.0
        %260 = vmatpush1.msra.mxu0 0.0
        %261 = vmatprep.subr.mxu0 0.0
        %262 = vmatpush1.msra.mxu0 0.0
        %263 = vmatprep.subr.mxu0 0.0
        %264 = vmatpush1.msra.mxu0 0.0
        %265 = vmatprep.subr.mxu0 0.0
        %266 = vmatpush1.msra.mxu0 0.0
        %267 = vmatprep.subr.mxu0 0.0
        %268 = vmatpush1.msra.mxu0 0.0
        %269 = vmatprep.subr.mxu0 0.0
        %270 = vmatpush1.msra.mxu0 0.0
        %271 = vmatprep.subr.mxu0 0.0
        %272 = vmatpush1.msra.mxu0 0.0
        %273 = vmatprep.subr.mxu0 0.0
        %274 = vmatpush1.msra.mxu0 0.0
        %275 = vmatprep.subr.mxu0 0.0
        %276 = vmatpush1.msra.mxu0 0.0
        %277 = vmatprep.subr.mxu0 0.0
        %278 = vmatpush1.msra.mxu0 0.0
        %279 = vmatprep.subr.mxu0 0.0
        %280 = vmatpush1.msra.mxu0 0.0
        %281 = vmatprep.subr.mxu0 0.0
        %282 = vmatpush1.msra.mxu0 0.0
        %283 = vmatprep.subr.mxu0 0.0
        %284 = vmatpush1.msra.mxu0 0.0
        %285 = vmatprep.subr.mxu0 0.0
        %286 = vmatpush1.msra.mxu0 0.0
        %287 = vmatprep.subr.mxu0 0.0
        %288 = vmatpush1.msra.mxu0 0.0
        %289 = vmatprep.subr.mxu0 0.0
        %290 = vmatpush1.msra.mxu0 0.0
        %291 = vmatprep.subr.mxu0 0.0
        %292 = vmatpush1.msra.mxu0 0.0
        %293 = vmatprep.subr.mxu0 0.0
        %294 = vmatpush1.msra.mxu0 0.0
        %295 = vmatprep.subr.mxu0 0.0
        %296 = vmatpush1.msra.mxu0 0.0
        %297 = vmatprep.subr.mxu0 0.0
        %298 = vmatpush1.msra.mxu0 0.0
        %299 = vmatprep.subr.mxu0 0.0
        %300 = vmatpush1.msra.mxu0 0.0
        %301 = vmatprep.subr.mxu0 0.0
        %302 = vmatpush1.msra.mxu0 0.0
        %303 = vmatprep.mubr.f32.mxu0 0.0
        %304 = vmatmul.mubr.f32.gmra.mrb[0].mxu0 %v228
        %v305 = vpop.f32.mrb[0].mxu0
        %v306 = vadd.f32 %v210, %v305
        %v307 = vpop.f32.mrb[0].mxu0
        %308 = vmatprep.mubr.f32.mxu0 0.0
        %309 = vmatmul.mubr.f32.gmra.mrb[0].mxu0 %v231
        %v310 = vpop.f32.mrb[0].mxu0
        %v311 = vadd.f32 %v211, %v310
        %v312 = vpop.f32.mrb[0].mxu0
        %313 = vmatprep.mubr.f32.mxu0 0.0
        %314 = vmatmul.mubr.f32.gmra.mrb[0].mxu0 %v234
        %v315 = vpop.f32.mrb[0].mxu0
        %v316 = vadd.f32 %v212, %v315
        %v317 = vpop.f32.mrb[0].mxu0
        %318 = vmatprep.mubr.f32.mxu0 0.0
        %319 = vmatmul.mubr.f32.gmra.mrb[0].mxu0 %v237
        %v320 = vpop.f32.mrb[0].mxu0
        %v321 = vadd.f32 %v213, %v320
        %v322 = vpop.f32.mrb[0].mxu0
        %323 = vdwg.mxu0
        %v324 = vmax.f32 %v306, 0.0
        %v325 = vmax.f32 %v311, 0.0
        %v326 = vmax.f32 %v316, 0.0
        %v327 = vmax.f32 %v321, 0.0
        %v328 = vadd.f32 %v223, %v324
        %v329 = vadd.f32 %v224, %v325
        %v330 = vadd.f32 %v225, %v326
        %v331 = vadd.f32 %v226, %v327
        %v332 = vmul.f32 %v222, %v328
        %v333 = vmul.f32 %v222, %v329
        %v334 = vmul.f32 %v222, %v330
        %v335 = vmul.f32 %v222, %v331
        %v337 = vsel %vm183, %v328, 0
        %v340 = vsel %vm183, %v329, 0
        %v343 = vsel %vm183, %v330, 0
        %v346 = vsel %vm183, %v331, 0
        %348 = vmatprep.subr.mxu0 0.0
        %349 = vmatpush1.msra.mxu0 %v214
        %350 = vmatprep.subr.mxu0 0.0
        %351 = vmatpush1.msra.mxu0 %v215
        %352 = vmatprep.subr.mxu0 0.0
        %353 = vmatpush1.msra.mxu0 %v216
        %354 = vmatprep.subr.mxu0 0.0
        %355 = vmatpush1.msra.mxu0 %v217
        %356 = vmatprep.subr.mxu0 0.0
        %357 = vmatpush1.msra.mxu0 %v218
        %358 = vmatprep.subr.mxu0 0.0
        %359 = vmatpush1.msra.mxu0 %v219
        %360 = vmatprep.subr.mxu0 0.0
        %361 = vmatpush1.msra.mxu0 %v220
        %362 = vmatprep.subr.mxu0 0.0
        %363 = vmatpush1.msra.mxu0 %v221
        %364 = vmatprep.subr.mxu0 0.0
        %365 = vmatpush1.msra.mxu0 0.0
        %366 = vmatprep.subr.mxu0 0.0
        %367 = vmatpush1.msra.mxu0 0.0
        %368 = vmatprep.subr.mxu0 0.0
        %369 = vmatpush1.msra.mxu0 0.0
        %370 = vmatprep.subr.mxu0 0.0
        %371 = vmatpush1.msra.mxu0 0.0
        %372 = vmatprep.subr.mxu0 0.0
        %373 = vmatpush1.msra.mxu0 0.0
        %374 = vmatprep.subr.mxu0 0.0
        %375 = vmatpush1.msra.mxu0 0.0
        %376 = vmatprep.subr.mxu0 0.0
        %377 = vmatpush1.msra.mxu0 0.0
        %378 = vmatprep.subr.mxu0 0.0
        %379 = vmatpush1.msra.mxu0 0.0
        %380 = vmatprep.subr.mxu0 0.0
        %381 = vmatpush1.msra.mxu0 0.0
        %382 = vmatprep.subr.mxu0 0.0
        %383 = vmatpush1.msra.mxu0 0.0
        %384 = vmatprep.subr.mxu0 0.0
        %385 = vmatpush1.msra.mxu0 0.0
        %386 = vmatprep.subr.mxu0 0.0
        %387 = vmatpush1.msra.mxu0 0.0
        %388 = vmatprep.subr.mxu0 0.0
        %389 = vmatpush1.msra.mxu0 0.0
        %390 = vmatprep.subr.mxu0 0.0
        %391 = vmatpush1.msra.mxu0 0.0
        %392 = vmatprep.subr.mxu0 0.0
        %393 = vmatpush1.msra.mxu0 0.0
        %394 = vmatprep.subr.mxu0 0.0
        %395 = vmatpush1.msra.mxu0 0.0
        %396 = vmatprep.subr.mxu0 0.0
        %397 = vmatpush1.msra.mxu0 0.0
        %398 = vmatprep.subr.mxu0 0.0
        %399 = vmatpush1.msra.mxu0 0.0
        %400 = vmatprep.subr.mxu0 0.0
        %401 = vmatpush1.msra.mxu0 0.0
        %402 = vmatprep.subr.mxu0 0.0
        %403 = vmatpush1.msra.mxu0 0.0
        %404 = vmatprep.subr.mxu0 0.0
        %405 = vmatpush1.msra.mxu0 0.0
        %406 = vmatprep.subr.mxu0 0.0
        %407 = vmatpush1.msra.mxu0 0.0
        %408 = vmatprep.subr.mxu0 0.0
        %409 = vmatpush1.msra.mxu0 0.0
        %410 = vmatprep.subr.mxu0 0.0
        %411 = vmatpush1.msra.mxu0 0.0
        %412 = vmatprep.mubr.f32.mxu0 0.0
        %413 = vmatmul.mubr.f32.gmra.mrb[0].mxu0 %v337
        %v414 = vpop.f32.mrb[0].mxu0
        %v415 = vadd.f32 %v210, %v414
        %v416 = vpop.f32.mrb[0].mxu0
        %417 = vmatprep.mubr.f32.mxu0 0.0
        %418 = vmatmul.mubr.f32.gmra.mrb[0].mxu0 %v340
        %v419 = vpop.f32.mrb[0].mxu0
        %v420 = vadd.f32 %v211, %v419
        %v421 = vpop.f32.mrb[0].mxu0
        %422 = vmatprep.mubr.f32.mxu0 0.0
        %423 = vmatmul.mubr.f32.gmra.mrb[0].mxu0 %v343
        %v424 = vpop.f32.mrb[0].mxu0
        %v425 = vadd.f32 %v212, %v424
        %v426 = vpop.f32.mrb[0].mxu0
        %427 = vmatprep.mubr.f32.mxu0 0.0
        %428 = vmatmul.mubr.f32.gmra.mrb[0].mxu0 %v346
        %v429 = vpop.f32.mrb[0].mxu0
        %v430 = vadd.f32 %v213, %v429
        %v431 = vpop.f32.mrb[0].mxu0
        %432 = vdwg.mxu0
        %v433 = vmax.f32 %v415, 0.0
        %v434 = vmax.f32 %v420, 0.0
        %v435 = vmax.f32 %v425, 0.0
        %v436 = vmax.f32 %v430, 0.0
        %v437 = vadd.f32 %v332, %v433
        %v438 = vadd.f32 %v333, %v434
        %v439 = vadd.f32 %v334, %v435
        %v440 = vadd.f32 %v335, %v436
        %v441 = vmul.f32 %v222, %v437
        %v442 = vmul.f32 %v222, %v438
        %v443 = vmul.f32 %v222, %v439
        %v444 = vmul.f32 %v222, %v440
        %v446 = vsel %vm183, %v437, 0
        %v449 = vsel %vm183, %v438, 0
        %v452 = vsel %vm183, %v439, 0
        %v455 = vsel %vm183, %v440, 0
        %457 = vmatprep.subr.mxu0 0.0
        %458 = vmatpush1.msra.mxu0 %v214
        %459 = vmatprep.subr.mxu0 0.0
        %460 = vmatpush1.msra.mxu0 %v215
        %461 = vmatprep.subr.mxu0 0.0
        %462 = vmatpush1.msra.mxu0 %v216
        %463 = vmatprep.subr.mxu0 0.0
        %464 = vmatpush1.msra.mxu0 %v217
        %465 = vmatprep.subr.mxu0 0.0
        %466 = vmatpush1.msra.mxu0 %v218
        %467 = vmatprep.subr.mxu0 0.0
        %468 = vmatpush1.msra.mxu0 %v219
        %469 = vmatprep.subr.mxu0 0.0
        %470 = vmatpush1.msra.mxu0 %v220
        %471 = vmatprep.subr.mxu0 0.0
        %472 = vmatpush1.msra.mxu0 %v221
        %473 = vmatprep.subr.mxu0 0.0
        %474 = vmatpush1.msra.mxu0 0.0
        %475 = vmatprep.subr.mxu0 0.0
        %476 = vmatpush1.msra.mxu0 0.0
        %477 = vmatprep.subr.mxu0 0.0
        %478 = vmatpush1.msra.mxu0 0.0
        %479 = vmatprep.subr.mxu0 0.0
        %480 = vmatpush1.msra.mxu0 0.0
        %481 = vmatprep.subr.mxu0 0.0
        %482 = vmatpush1.msra.mxu0 0.0
        %483 = vmatprep.subr.mxu0 0.0
        %484 = vmatpush1.msra.mxu0 0.0
        %485 = vmatprep.subr.mxu0 0.0
        %486 = vmatpush1.msra.mxu0 0.0
        %487 = vmatprep.subr.mxu0 0.0
        %488 = vmatpush1.msra.mxu0 0.0
        %489 = vmatprep.subr.mxu0 0.0
        %490 = vmatpush1.msra.mxu0 0.0
        %491 = vmatprep.subr.mxu0 0.0
        %492 = vmatpush1.msra.mxu0 0.0
        %493 = vmatprep.subr.mxu0 0.0
        %494 = vmatpush1.msra.mxu0 0.0
        %495 = vmatprep.subr.mxu0 0.0
        %496 = vmatpush1.msra.mxu0 0.0
        %497 = vmatprep.subr.mxu0 0.0
        %498 = vmatpush1.msra.mxu0 0.0
        %499 = vmatprep.subr.mxu0 0.0
        %500 = vmatpush1.msra.mxu0 0.0
        %501 = vmatprep.subr.mxu0 0.0
        %502 = vmatpush1.msra.mxu0 0.0
        %503 = vmatprep.subr.mxu0 0.0
        %504 = vmatpush1.msra.mxu0 0.0
        %505 = vmatprep.subr.mxu0 0.0
        %506 = vmatpush1.msra.mxu0 0.0
        %507 = vmatprep.subr.mxu0 0.0
        %508 = vmatpush1.msra.mxu0 0.0
        %509 = vmatprep.subr.mxu0 0.0
        %510 = vmatpush1.msra.mxu0 0.0
        %511 = vmatprep.subr.mxu0 0.0
        %512 = vmatpush1.msra.mxu0 0.0
        %513 = vmatprep.subr.mxu0 0.0
        %514 = vmatpush1.msra.mxu0 0.0
        %515 = vmatprep.subr.mxu0 0.0
        %516 = vmatpush1.msra.mxu0 0.0
        %517 = vmatprep.subr.mxu0 0.0
        %518 = vmatpush1.msra.mxu0 0.0
        %519 = vmatprep.subr.mxu0 0.0
        %520 = vmatpush1.msra.mxu0 0.0
        %521 = vmatprep.mubr.f32.mxu0 0.0
        %522 = vmatmul.mubr.f32.gmra.mrb[0].mxu0 %v446
        %v523 = vpop.f32.mrb[0].mxu0
        %v524 = vadd.f32 %v210, %v523
        %v525 = vpop.f32.mrb[0].mxu0
        %526 = vmatprep.mubr.f32.mxu0 0.0
        %527 = vmatmul.mubr.f32.gmra.mrb[0].mxu0 %v449
        %v528 = vpop.f32.mrb[0].mxu0
        %v529 = vadd.f32 %v211, %v528
        %v530 = vpop.f32.mrb[0].mxu0
        %531 = vmatprep.mubr.f32.mxu0 0.0
        %532 = vmatmul.mubr.f32.gmra.mrb[0].mxu0 %v452
        %v533 = vpop.f32.mrb[0].mxu0
        %v534 = vadd.f32 %v212, %v533
        %v535 = vpop.f32.mrb[0].mxu0
        %536 = vmatprep.mubr.f32.mxu0 0.0
        %537 = vmatmul.mubr.f32.gmra.mrb[0].mxu0 %v455
        %v538 = vpop.f32.mrb[0].mxu0
        %v539 = vadd.f32 %v213, %v538
        %v540 = vpop.f32.mrb[0].mxu0
        %541 = vdwg.mxu0
        %v542 = vmax.f32 %v524, 0.0
        %v543 = vmax.f32 %v529, 0.0
        %v544 = vmax.f32 %v534, 0.0
        %v545 = vmax.f32 %v539, 0.0
        %v546 = vadd.f32 %v441, %v542
        %v547 = vadd.f32 %v442, %v543
        %v548 = vadd.f32 %v443, %v544
        %v549 = vadd.f32 %v444, %v545
        %v550 = vmul.f32 %v222, %v546
        %v551 = vmul.f32 %v222, %v547
        %v552 = vmul.f32 %v222, %v548
        %v553 = vmul.f32 %v222, %v549
        %v555 = vsel %vm183, %v546, 0
        %v558 = vsel %vm183, %v547, 0
        %v561 = vsel %vm183, %v548, 0
        %v564 = vsel %vm183, %v549, 0
        %566 = vmatprep.subr.mxu0 0.0
        %567 = vmatpush1.msra.mxu0 %v214
        %568 = vmatprep.subr.mxu0 0.0
        %569 = vmatpush1.msra.mxu0 %v215
        %570 = vmatprep.subr.mxu0 0.0
        %571 = vmatpush1.msra.mxu0 %v216
        %572 = vmatprep.subr.mxu0 0.0
        %573 = vmatpush1.msra.mxu0 %v217
        %574 = vmatprep.subr.mxu0 0.0
        %575 = vmatpush1.msra.mxu0 %v218
        %576 = vmatprep.subr.mxu0 0.0
        %577 = vmatpush1.msra.mxu0 %v219
        %578 = vmatprep.subr.mxu0 0.0
        %579 = vmatpush1.msra.mxu0 %v220
        %580 = vmatprep.subr.mxu0 0.0
        %581 = vmatpush1.msra.mxu0 %v221
        %582 = vmatprep.subr.mxu0 0.0
        %583 = vmatpush1.msra.mxu0 0.0
        %584 = vmatprep.subr.mxu0 0.0
        %585 = vmatpush1.msra.mxu0 0.0
        %586 = vmatprep.subr.mxu0 0.0
        %587 = vmatpush1.msra.mxu0 0.0
        %588 = vmatprep.subr.mxu0 0.0
        %589 = vmatpush1.msra.mxu0 0.0
        %590 = vmatprep.subr.mxu0 0.0
        %591 = vmatpush1.msra.mxu0 0.0
        %592 = vmatprep.subr.mxu0 0.0
        %593 = vmatpush1.msra.mxu0 0.0
        %594 = vmatprep.subr.mxu0 0.0
        %595 = vmatpush1.msra.mxu0 0.0
        %596 = vmatprep.subr.mxu0 0.0
        %597 = vmatpush1.msra.mxu0 0.0
        %598 = vmatprep.subr.mxu0 0.0
        %599 = vmatpush1.msra.mxu0 0.0
        %600 = vmatprep.subr.mxu0 0.0
        %601 = vmatpush1.msra.mxu0 0.0
        %602 = vmatprep.subr.mxu0 0.0
        %603 = vmatpush1.msra.mxu0 0.0
        %604 = vmatprep.subr.mxu0 0.0
        %605 = vmatpush1.msra.mxu0 0.0
        %606 = vmatprep.subr.mxu0 0.0
        %607 = vmatpush1.msra.mxu0 0.0
        %608 = vmatprep.subr.mxu0 0.0
        %609 = vmatpush1.msra.mxu0 0.0
        %610 = vmatprep.subr.mxu0 0.0
        %611 = vmatpush1.msra.mxu0 0.0
        %612 = vmatprep.subr.mxu0 0.0
        %613 = vmatpush1.msra.mxu0 0.0
        %614 = vmatprep.subr.mxu0 0.0
        %615 = vmatpush1.msra.mxu0 0.0
        %616 = vmatprep.subr.mxu0 0.0
        %617 = vmatpush1.msra.mxu0 0.0
        %618 = vmatprep.subr.mxu0 0.0
        %619 = vmatpush1.msra.mxu0 0.0
        %620 = vmatprep.subr.mxu0 0.0
        %621 = vmatpush1.msra.mxu0 0.0
        %622 = vmatprep.subr.mxu0 0.0
        %623 = vmatpush1.msra.mxu0 0.0
        %624 = vmatprep.subr.mxu0 0.0
        %625 = vmatpush1.msra.mxu0 0.0
        %626 = vmatprep.subr.mxu0 0.0
        %627 = vmatpush1.msra.mxu0 0.0
        %628 = vmatprep.subr.mxu0 0.0
        %629 = vmatpush1.msra.mxu0 0.0
        %630 = vmatprep.mubr.f32.mxu0 0.0
        %631 = vmatmul.mubr.f32.gmra.mrb[0].mxu0 %v555
        %v632 = vpop.f32.mrb[0].mxu0
        %v633 = vadd.f32 %v210, %v632
        %v634 = vpop.f32.mrb[0].mxu0
        %635 = vmatprep.mubr.f32.mxu0 0.0
        %636 = vmatmul.mubr.f32.gmra.mrb[0].mxu0 %v558
        %v637 = vpop.f32.mrb[0].mxu0
        %v638 = vadd.f32 %v211, %v637
        %v639 = vpop.f32.mrb[0].mxu0
        %640 = vmatprep.mubr.f32.mxu0 0.0
        %641 = vmatmul.mubr.f32.gmra.mrb[0].mxu0 %v561
        %v642 = vpop.f32.mrb[0].mxu0
        %v643 = vadd.f32 %v212, %v642
        %v644 = vpop.f32.mrb[0].mxu0
        %645 = vmatprep.mubr.f32.mxu0 0.0
        %646 = vmatmul.mubr.f32.gmra.mrb[0].mxu0 %v564
        %v647 = vpop.f32.mrb[0].mxu0
        %v648 = vadd.f32 %v213, %v647
        %v649 = vpop.f32.mrb[0].mxu0
        %650 = vdwg.mxu0
        %v651 = vmax.f32 %v633, 0.0
        %v652 = vmax.f32 %v638, 0.0
        %v653 = vmax.f32 %v643, 0.0
        %v654 = vmax.f32 %v648, 0.0
        %v655 = vadd.f32 %v550, %v651
        %v656 = vadd.f32 %v551, %v652
        %v657 = vadd.f32 %v552, %v653
        %v658 = vadd.f32 %v553, %v654
        %659 = vst.msk [vmem:[#allocation2] sm:$0xff] %vm183, %v655
        %660 = vst.msk [vmem:[#allocation2 + $0x8] sm:$0xff] %vm183, %v656
        %661 = vst.msk [vmem:[#allocation2 + $0x10] sm:$0xff] %vm183, %v657
        %662 = vst.msk [vmem:[#allocation2 + $0x18] sm:$0xff] %vm183, %v658
        %v663 = vsub.f32 %v655, %v546
        %v664 = vsub.f32 %v656, %v547
        %v665 = vsub.f32 %v657, %v548
        %v666 = vsub.f32 %v658, %v549
        %v667 = vand.u32 2147483647, %v663
        %v668 = vand.u32 2147483647, %v664
        %v669 = vand.u32 2147483647, %v665
        %v670 = vand.u32 2147483647, %v666
        %v671 = vsel %vm183, %v667, -inf
        %v672 = vsel %vm183, %v668, -inf
        %v673 = vsel %vm183, %v669, -inf
        %v674 = vsel %vm183, %v670, -inf
        %v675 = vmax.f32 %v671, %v672
        %v676 = vmax.f32 %v673, %v674
        %v677 = vmax.f32 %v675, %v676
        %678 = vmax.xlane.f32.xlu0 %v677
        %v679 = vpop.xlane.xlu0 %678
        %v680 = vrot.slane %v679, 4
        %v681 = vmax.f32 %v679, %v680
        %v682 = vrot.slane %v681, 2
        %v683 = vmax.f32 %v681, %v682
        %v684 = vrot.slane %v683, 1
        %v685 = vmax.f32 %v683, %v684
        %s686 = vtos %v685
        %p687 = scmp.lt.f32.partialorder %s686, 1e-06
        %s688 = scalar_select %p687, 1, 0
        %689 = sst [smem:[%s192]] %s688
      $region44: #{tpu_custom_call.1} parent=37 // pred_fallthru
        _
    $region38: #{tpu_custom_call.1} parent=1 // loop_footer
      %s200 = sadd.s32 1, %s196
    $region39: #{tpu_custom_call.1} parent=1 // loop_footer_branch
      %195 = sbr.rel target = $region35
    $region40: #{tpu_custom_call.1} parent=1 // loop_exit
      _
    %v690 = vld [vmem:[#allocation2] sm:$0xff]
    %v691 = vld [vmem:[#allocation2 + $0x8] sm:$0xff]
    %v692 = vld [vmem:[#allocation2 + $0x10] sm:$0xff]
    %v693 = vld [vmem:[#allocation2 + $0x18] sm:$0xff]
    %v694 = vmax.f32 %v690, 0.0
    %v695 = vmax.f32 %v691, 0.0
    %v696 = vmax.f32 %v692, 0.0
    %v697 = vmax.f32 %v693, 0.0
    %v698 = vld [vmem:[%s4] sm:$0xff]
    %v700 = vsel %vm85, %v698, 0
    %702 = vmatprep.subr.mxu0 0.0
    %703 = vmatpush1.msra.mxu0 %v694
    %704 = vmatprep.subr.mxu0 0.0
    %705 = vmatpush1.msra.mxu0 %v695
    %706 = vmatprep.subr.mxu0 0.0
    %707 = vmatpush1.msra.mxu0 %v696
    %708 = vmatprep.subr.mxu0 0.0
    %709 = vmatpush1.msra.mxu0 %v697
    %710 = vmatprep.subr.mxu0 0.0
    %711 = vmatpush1.msra.mxu0 0.0
    %712 = vmatprep.subr.mxu0 0.0
    %713 = vmatpush1.msra.mxu0 0.0
    %714 = vmatprep.subr.mxu0 0.0
    %715 = vmatpush1.msra.mxu0 0.0
    %716 = vmatprep.subr.mxu0 0.0
    %717 = vmatpush1.msra.mxu0 0.0
    %718 = vmatprep.subr.mxu0 0.0
    %719 = vmatpush1.msra.mxu0 0.0
    %720 = vmatprep.subr.mxu0 0.0
    %721 = vmatpush1.msra.mxu0 0.0
    %722 = vmatprep.subr.mxu0 0.0
    %723 = vmatpush1.msra.mxu0 0.0
    %724 = vmatprep.subr.mxu0 0.0
    %725 = vmatpush1.msra.mxu0 0.0
    %726 = vmatprep.subr.mxu0 0.0
    %727 = vmatpush1.msra.mxu0 0.0
    %728 = vmatprep.subr.mxu0 0.0
    %729 = vmatpush1.msra.mxu0 0.0
    %730 = vmatprep.subr.mxu0 0.0
    %731 = vmatpush1.msra.mxu0 0.0
    %732 = vmatprep.subr.mxu0 0.0
    %733 = vmatpush1.msra.mxu0 0.0
    %734 = vmatprep.subr.mxu0 0.0
    %735 = vmatpush1.msra.mxu0 0.0
    %736 = vmatprep.subr.mxu0 0.0
    %737 = vmatpush1.msra.mxu0 0.0
    %738 = vmatprep.subr.mxu0 0.0
    %739 = vmatpush1.msra.mxu0 0.0
    %740 = vmatprep.subr.mxu0 0.0
    %741 = vmatpush1.msra.mxu0 0.0
    %742 = vmatprep.subr.mxu0 0.0
    %743 = vmatpush1.msra.mxu0 0.0
    %744 = vmatprep.subr.mxu0 0.0
    %745 = vmatpush1.msra.mxu0 0.0
    %746 = vmatprep.subr.mxu0 0.0
    %747 = vmatpush1.msra.mxu0 0.0
    %748 = vmatprep.subr.mxu0 0.0
    %749 = vmatpush1.msra.mxu0 0.0
    %750 = vmatprep.subr.mxu0 0.0
    %751 = vmatpush1.msra.mxu0 0.0
    %752 = vmatprep.subr.mxu0 0.0
    %753 = vmatpush1.msra.mxu0 0.0
    %754 = vmatprep.subr.mxu0 0.0
    %755 = vmatpush1.msra.mxu0 0.0
    %756 = vmatprep.subr.mxu0 0.0
    %757 = vmatpush1.msra.mxu0 0.0
    %758 = vmatprep.subr.mxu0 0.0
    %759 = vmatpush1.msra.mxu0 0.0
    %760 = vmatprep.subr.mxu0 0.0
    %761 = vmatpush1.msra.mxu0 0.0
    %762 = vmatprep.subr.mxu0 0.0
    %763 = vmatpush1.msra.mxu0 0.0
    %764 = vmatprep.subr.mxu0 0.0
    %765 = vmatpush1.msra.mxu0 0.0
    %766 = vmatprep.mubr.f32.mxu0 0.0
    %767 = vmatmul.mubr.f32.gmra.mrb[0].mxu0 %v700
    %v768 = vpop.f32.mrb[0].mxu0
    %v769 = vadd.f32 0.0, %v768
    %v770 = vpop.f32.mrb[0].mxu0
    %771 = vdwg.mxu0
    %772 = vst.msk [vmem:[#allocation11] sm:$0xff] %vm183, %v769
    // Predicated region
    $region45: #{tpu_custom_call.1} parent=1 // pred_check
      _
    $region46: #{tpu_custom_call.1} parent=1 // pred_check_branch
      %774 = sbr.rel (0) target = $region48
    $region47: #{tpu_custom_call.1} parent=1 // pred_region
      %s776 = ssub.s32 128, 128
      %777 = vsyncadd [#allocation8], %s776
      %s779 = sshll.u32 [#allocation11], 4
      %s780 = int_to_ptr.vmem [resolvable:$true] %s779
      %782 = dma.vmem_to_hbm [thread:$0]  %s780, 128, %s6, [#allocation8]
    $region48: #{tpu_custom_call.1} parent=1 // pred_fallthru
      _
    // Predicated region
    $region49: #{tpu_custom_call.1} parent=1 // pred_check
      _
    $region50: #{tpu_custom_call.1} parent=1 // pred_check_branch
      %784 = sbr.rel (0) target = $region52
    $region51: #{tpu_custom_call.1} parent=1 // pred_region
      %785 = dma.done [#allocation8], 128
    $region52: #{tpu_custom_call.1} parent=1 // pred_fallthru
      _
    %786 = vsyncpa [#allocation7], 1
    %787 = vsyncpa [#allocation10], 1
    %788 = vsyncpa [#allocation8], 1

</llo_original>
